<compile_context>
chip_gen: v5e
topology: v5e:2x2
jax: 0.10.0
libtpu: 0.0.40
codegen_flags: <defaults>
</compile_context>

<pallas_src>
import functools

import jax
import jax.numpy as jnp
from jax.experimental import pallas as pl
from jax.experimental.pallas import tpu as pltpu

LANE = 128  # TPU vreg lane width


def _conv_bn_relu_kernel(p_ref, w_ref, shift_ref, o_ref, *, has_relu):
    # p_ref:     (TM, Kp)   im2col patches tile (zero-padded along K)
    # w_ref:     (Kp, Cp)   conv weights with BN scale folded in (zero-padded)
    # shift_ref: (1,  Cp)   folded conv-bias + BN shift
    # o_ref:     (TM, Cp)   output tile (lane-dense: Cp multiple of 128)
    acc = jnp.dot(p_ref[...], w_ref[...], preferred_element_type=jnp.float32)
    y = acc + shift_ref[...]
    if has_relu:
        y = jnp.maximum(y, 0.0)
    o_ref[...] = y.astype(o_ref.dtype)


def _im2col(x, kh, kw, stride, pad):
    # x: (N, Cin, H, W) -> patches (N*OH*OW, Cin*KH*KW), K ordered (Cin, KH, KW)
    n, c, h, w = x.shape
    oh = (h + 2 * pad - kh) // stride + 1
    ow = (w + 2 * pad - kw) // stride + 1
    xp = jnp.pad(x, ((0, 0), (0, 0), (pad, pad), (pad, pad)))
    taps = []
    for i in range(kh):
        for j in range(kw):
            # element (n, c, oy, ox) = xp[n, c, oy*stride + i, ox*stride + j]
            taps.append(xp[:, :, i:i + stride * oh:stride, j:j + stride * ow:stride])
    patches = jnp.stack(taps, axis=0)                  # (KH*KW, N, Cin, OH, OW)
    patches = patches.reshape(kh * kw, n, c, oh * ow)  # (T, N, Cin, OHW)
    patches = patches.transpose(1, 3, 2, 0)            # (N, OHW, Cin, T)
    return patches.reshape(n * oh * ow, c * kh * kw), oh, ow


def conv_bn_relu_pallas(x, weight, bias, gamma, beta, running_mean, running_var,
                        *, stride=1, padding=1, eps=1e-5,
                        has_bn=True, has_relu=True, tile_m=512):
    n, cin, h, w = x.shape
    cout, cin_w, kh, kw = weight.shape
    assert cin == cin_w

    patches, oh, ow = _im2col(x, kh, kw, stride, padding)        # (M, K)
    m, k = patches.shape

    # Fold BN (inference mode) and the conv bias into the weights / a single shift:
    #   y = (conv(x) + bias - mean) * gamma/sqrt(var+eps) + beta
    #     = conv(x) * scale + (bias*scale + beta - mean*scale)
    w_mat = weight.reshape(cout, cin * kh * kw).T.astype(jnp.float32)   # (K, Cout)
    if has_bn:
        scale = gamma / jnp.sqrt(running_var + eps)                     # (Cout,)
        shift = beta - running_mean * scale + bias * scale
        w_mat = w_mat * scale[None, :]
    else:
        shift = bias

    # Pad to TPU-friendly shapes: lane-dense output (Cout -> x128), full-width
    # contraction (K -> x128), row tiles of tile_m (multiple of 8).
    k_pad = pl.cdiv(k, LANE) * LANE
    c_pad = pl.cdiv(cout, LANE) * LANE
    tile_m = max(8, min(tile_m, pl.cdiv(m, 8) * 8))
    m_pad = pl.cdiv(m, tile_m) * tile_m

    patches = jnp.pad(patches, ((0, m_pad - m), (0, k_pad - k)))
    w_mat = jnp.pad(w_mat, ((0, k_pad - k), (0, c_pad - cout)))
    shift = jnp.pad(shift.astype(jnp.float32), (0, c_pad - cout)).reshape(1, c_pad)

    kernel = functools.partial(_conv_bn_relu_kernel, has_relu=has_relu)

    out_flat = pl.pallas_call(
        kernel,
        out_shape=jax.ShapeDtypeStruct((m_pad, c_pad), x.dtype),
        grid_spec=pltpu.PrefetchScalarGridSpec(
            num_scalar_prefetch=0,
            grid=(m_pad // tile_m,),
            in_specs=[
                pl.BlockSpec((tile_m, k_pad), lambda i: (i, 0)),
                pl.BlockSpec((k_pad, c_pad), lambda i: (0, 0)),   # constant block
                pl.BlockSpec((1, c_pad), lambda i: (0, 0)),       # constant block
            ],
            out_specs=pl.BlockSpec((tile_m, c_pad), lambda i: (i, 0)),
        ),
        compiler_params=pltpu.CompilerParams(
            dimension_semantics=("parallel",),
            vmem_limit_bytes=32 * 1024 * 1024,
        ),
    )(patches, w_mat, shift)

    # Slice off row/channel padding, return NCHW to match the PyTorch module.
    out = out_flat[:m, :cout].reshape(n, oh, ow, cout).transpose(0, 3, 1, 2)
    return out


def _reference(x, weight, bias, gamma, beta, mean, var, *, stride, padding, eps,
               has_bn, has_relu):
    y = jax.lax.conv_general_dilated(
        x, weight, window_strides=(stride, stride),
        padding=[(padding, padding), (padding, padding)],
        dimension_numbers=("NCHW", "OIHW", "NCHW"))
    y = y + bias.reshape(1, -1, 1, 1)
    if has_bn:
        y = (y - mean.reshape(1, -1, 1, 1)) / jnp.sqrt(var + eps).reshape(1, -1, 1, 1)
        y = y * gamma.reshape(1, -1, 1, 1) + beta.reshape(1, -1, 1, 1)
    if has_relu:
        y = jnp.maximum(y, 0.0)
    return y


if __name__ == "__main__":
    # Small config consistent with the module: in_planes=4, out_planes=8,
    # kernel_size=3, stride=1, padding=1.
    N, Cin, H, W = 2, 4, 16, 16
    Cout, KH, KW = 8, 3, 3
    stride, padding, eps = 1, 1, 1e-5

    key = jax.random.PRNGKey(0)
    kx, kw_, kb, kg, kbe, km, kv = jax.random.split(key, 7)

    x = jax.random.normal(kx, (N, Cin, H, W), jnp.float32)
    weight = jax.random.normal(kw_, (Cout, Cin, KH, KW), jnp.float32) * 0.1
    bias = jax.random.normal(kb, (Cout,), jnp.float32) * 0.1
    gamma = 1.0 + 0.1 * jax.random.normal(kg, (Cout,), jnp.float32)
    beta = 0.1 * jax.random.normal(kbe, (Cout,), jnp.float32)
    running_mean = 0.1 * jax.random.normal(km, (Cout,), jnp.float32)
    running_var = jnp.abs(jax.random.normal(kv, (Cout,), jnp.float32)) + 0.5

    out = conv_bn_relu_pallas(x, weight, bias, gamma, beta, running_mean, running_var,
                              stride=stride, padding=padding, eps=eps,
                              has_bn=True, has_relu=True)
    out = jax.block_until_ready(out)

    ref = _reference(x, weight, bias, gamma, beta, running_mean, running_var,
                     stride=stride, padding=padding, eps=eps,
                     has_bn=True, has_relu=True)

    assert out.shape == (N, Cout, H, W), out.shape
    err = float(jnp.max(jnp.abs(out - ref)))
    assert jnp.allclose(out, ref, atol=1e-4, rtol=1e-4), err
    print("KERNEL_OK")
</pallas_src>

<mosaic_0001>
module attributes {stable_mosaic.version = 11 : i64} {
  func.func @_conv_bn_relu_kernel(%arg0: i32, %arg1: memref<512x128xf32, #tpu.memory_space<vmem>>, %arg2: memref<128x128xf32, #tpu.memory_space<vmem>>, %arg3: memref<1x128xf32, #tpu.memory_space<vmem>>, %arg4: memref<512x128xf32, #tpu.memory_space<vmem>>) attributes {dimension_semantics = [#tpu.dimension_semantics<parallel>], iteration_bounds = array<i64: 1>, scalar_prefetch = 0 : i64, scratch_operands = 0 : i64, tpu.core_type = #tpu.core_type<tc>, window_params = [{transform_indices = @transform_0, window_bounds = array<i64: 512, 128>}, {pipeline_mode = #tpu.pipeline_mode<synchronous>, transform_indices = @transform_1, window_bounds = array<i64: 128, 128>}, {pipeline_mode = #tpu.pipeline_mode<synchronous>, transform_indices = @transform_2, window_bounds = array<i64: 1, 128>}, {transform_indices = @transform_3, window_bounds = array<i64: 512, 128>}]} {
    %c0 = arith.constant 0 : index
    %c0_0 = arith.constant 0 : index
    %0 = vector.load %arg1[%c0, %c0_0] : memref<512x128xf32, #tpu.memory_space<vmem>>, vector<512x128xf32>
    %c0_1 = arith.constant 0 : index
    %c0_2 = arith.constant 0 : index
    %1 = vector.load %arg2[%c0_1, %c0_2] : memref<128x128xf32, #tpu.memory_space<vmem>>, vector<128x128xf32>
    %cst = arith.constant dense<0.000000e+00> : vector<512x128xf32>
    %2 = tpu.matmul %0, %1, %cst {dimension_numbers = #tpu.dot_dimension_numbers<[1], [0], [0], [1], [0, 0, 1, 1], [], []>} : vector<512x128xf32>, vector<128x128xf32>, vector<512x128xf32> -> vector<512x128xf32>
    %c0_3 = arith.constant 0 : index
    %c0_4 = arith.constant 0 : index
    %3 = vector.load %arg3[%c0_3, %c0_4] : memref<1x128xf32, #tpu.memory_space<vmem>>, vector<1x128xf32>
    %4 = vector.broadcast %3 : vector<1x128xf32> to vector<512x128xf32>
    %5 = arith.addf %2, %4 : vector<512x128xf32>
    %cst_5 = arith.constant 0.000000e+00 : f32
    %6 = vector.broadcast %cst_5 : f32 to vector<512x128xf32>
    %7 = arith.maximumf %5, %6 : vector<512x128xf32>
    %c0_6 = arith.constant 0 : index
    %c0_7 = arith.constant 0 : index
    %8 = vector.load %arg4[%c0_6, %c0_7] : memref<512x128xf32, #tpu.memory_space<vmem>>, vector<512x128xf32>
    tpu.vector_store %arg4[%c0_6, %c0_7], %7 {strides = array<i32>} : memref<512x128xf32, #tpu.memory_space<vmem>>, vector<512x128xf32>,
    return
  }
  func.func @transform_0(%arg0: i32) -> (i32, i32) {
    %c0_i32 = arith.constant 0 : i32
    %c0_i32_0 = arith.constant 0 : i32
    return %arg0, %c0_i32 : i32, i32
  }
  func.func @transform_1(%arg0: i32) -> (i32, i32) {
    %c0_i32 = arith.constant 0 : i32
    %c0_i32_0 = arith.constant 0 : i32
    %c0_i32_1 = arith.constant 0 : i32
    return %c0_i32, %c0_i32_0 : i32, i32
  }
  func.func @transform_2(%arg0: i32) -> (i32, i32) {
    %c0_i32 = arith.constant 0 : i32
    %c0_i32_0 = arith.constant 0 : i32
    %c0_i32_1 = arith.constant 0 : i32
    return %c0_i32, %c0_i32_0 : i32, i32
  }
  func.func @transform_3(%arg0: i32) -> (i32, i32) {
    %c0_i32 = arith.constant 0 : i32
    %c0_i32_0 = arith.constant 0 : i32
    return %arg0, %c0_i32 : i32, i32
  }
}

</mosaic_0001>

<llo_original>
// kernel: tpu_custom_call.1
$region0: #{tpu_custom_call.1}
  #allocation0 [shape = 'u32[]', space=smem, size = 0x4, offset = 0x4, fixed_abs, tag = 'smem constant byte address 0x4 - core index']
  #allocation1 [shape = 'u32[72,128]{1,0:T(1,128)}', space=vmem, size = 0x9000, scoped, tag = 'internal scratch']
  %s0 = inlined_call_operand.hbm [shape: f32[512,128], index: 0, kind: input, shape index: {}]
  %s1 = inlined_call_operand.hbm [shape: f32[128,128], index: 1, kind: input, shape index: {}]
  %s2 = inlined_call_operand.vmem [shape: f32[1,128], index: 2, kind: input, shape index: {}]
  %s3 = inlined_call_operand.hbm [shape: f32[512,128], index: 3, kind: output, shape index: {}]
  %s4 = sld [smem:[#allocation0]]
  $region30: #{tpu_custom_call.1} parent=0
    _
  %s6 = ssub.s32 1, %s4
  %s7 = scalar_select 0, %s6, %s4
  $region1: #{tpu_custom_call.1} parent=0
    #allocation2 [shape = 'u8[262144]{0}', space=vmem, size = 0x40000, scoped, tag = 'input window, operand 0, single buffered']
    #allocation3 [shape = 's32[1]{0}', space=sflag, size = 0x4, scoped, tag = 'scoped memory for tpu_custom_call.1']
    #allocation4 [shape = 's32[1]{0}', space=sflag, size = 0x4, scoped, tag = 'scoped memory for tpu_custom_call.1']
    #allocation5 [shape = 'u8[65536]{0}', space=vmem, size = 0x10000, scoped, tag = 'input window, operand 1, single buffered']
    #allocation6 [shape = 's32[1]{0}', space=sflag, size = 0x4, scoped, tag = 'scoped memory for tpu_custom_call.1']
    #allocation7 [shape = 'u8[262144]{0}', space=vmem, size = 0x40000, scoped, tag = 'output window, operand 0, single buffered']
    %8 = vsyncpa [#allocation3], 0
    %9 = vsyncpa [#allocation6], 0
    %10 = vsyncpa [#allocation4], 0
    // Predicated region
    $region2: #{tpu_custom_call.1} parent=1 // pred_check
      _
    $region3: #{tpu_custom_call.1} parent=1 // pred_check_branch
      %12 = sbr.rel (0) target = $region5
    $region4: #{tpu_custom_call.1} parent=1 // pred_region
      %14 = vsyncadd [#allocation3], 0
      %s15 = sshll.u32 %s0, 4
      %s16 = int_to_ptr.hbm [resolvable:$true] %s15
      %s17 = sshll.u32 [#allocation2], 4
      %s18 = int_to_ptr.vmem [resolvable:$true] %s17
      %23 = dma.hbm_to_vmem [thread:$0]  %s16, 8192, %s18, [#allocation3], 128, 128, 8
    $region5: #{tpu_custom_call.1} parent=1 // pred_fallthru
      _
    // Predicated region
    $region6: #{tpu_custom_call.1} parent=1 // pred_check
      _
    $region7: #{tpu_custom_call.1} parent=1 // pred_check_branch
      %25 = sbr.rel (0) target = $region9
    $region8: #{tpu_custom_call.1} parent=1 // pred_region
      %27 = vsyncadd [#allocation6], 0
      %s28 = sshll.u32 %s1, 4
      %s29 = int_to_ptr.hbm [resolvable:$true] %s28
      %s30 = sshll.u32 [#allocation5], 4
      %s31 = int_to_ptr.vmem [resolvable:$true] %s30
      %36 = dma.hbm_to_vmem [thread:$0]  %s29, 2048, %s31, [#allocation6], 128, 128, 8
    $region9: #{tpu_custom_call.1} parent=1 // pred_fallthru
      _
    // Predicated region
    $region10: #{tpu_custom_call.1} parent=1 // pred_check
      _
    $region11: #{tpu_custom_call.1} parent=1 // pred_check_branch
      %38 = sbr.rel (0) target = $region13
    $region12: #{tpu_custom_call.1} parent=1 // pred_region
      _
    $region13: #{tpu_custom_call.1} parent=1 // pred_fallthru
      _
    // Predicated region
    $region14: #{tpu_custom_call.1} parent=1 // pred_check
      _
    $region15: #{tpu_custom_call.1} parent=1 // pred_check_branch
      %40 = sbr.rel (0) target = $region17
    $region16: #{tpu_custom_call.1} parent=1 // pred_region
      %42 = dma.done [#allocation3], 8192
    $region17: #{tpu_custom_call.1} parent=1 // pred_fallthru
      _
    // Predicated region
    $region18: #{tpu_custom_call.1} parent=1 // pred_check
      _
    $region19: #{tpu_custom_call.1} parent=1 // pred_check_branch
      %44 = sbr.rel (0) target = $region21
    $region20: #{tpu_custom_call.1} parent=1 // pred_region
      %46 = dma.done [#allocation6], 2048
    $region21: #{tpu_custom_call.1} parent=1 // pred_fallthru
      _
    %v47 = vld [vmem:[#allocation2] sm:$0xff]
    %v48 = vld [vmem:[#allocation2 + $0x8] sm:$0xff]
    %v49 = vld [vmem:[#allocation2 + $0x10] sm:$0xff]
    %v50 = vld [vmem:[#allocation2 + $0x18] sm:$0xff]
    %v51 = vld [vmem:[#allocation2 + $0x20] sm:$0xff]
    %v52 = vld [vmem:[#allocation2 + $0x28] sm:$0xff]
    %v53 = vld [vmem:[#allocation2 + $0x30] sm:$0xff]
    %v54 = vld [vmem:[#allocation2 + $0x38] sm:$0xff]
    %v55 = vld [vmem:[#allocation2 + $0x40] sm:$0xff]
    %v56 = vld [vmem:[#allocation2 + $0x48] sm:$0xff]
    %v57 = vld [vmem:[#allocation2 + $0x50] sm:$0xff]
    %v58 = vld [vmem:[#allocation2 + $0x58] sm:$0xff]
    %v59 = vld [vmem:[#allocation2 + $0x60] sm:$0xff]
    %v60 = vld [vmem:[#allocation2 + $0x68] sm:$0xff]
    %v61 = vld [vmem:[#allocation2 + $0x70] sm:$0xff]
    %v62 = vld [vmem:[#allocation2 + $0x78] sm:$0xff]
    %v63 = vld [vmem:[#allocation2 + $0x80] sm:$0xff]
    %v64 = vld [vmem:[#allocation2 + $0x88] sm:$0xff]
    %v65 = vld [vmem:[#allocation2 + $0x90] sm:$0xff]
    %v66 = vld [vmem:[#allocation2 + $0x98] sm:$0xff]
    %v67 = vld [vmem:[#allocation2 + $0xa0] sm:$0xff]
    %v68 = vld [vmem:[#allocation2 + $0xa8] sm:$0xff]
    %v69 = vld [vmem:[#allocation2 + $0xb0] sm:$0xff]
    %v70 = vld [vmem:[#allocation2 + $0xb8] sm:$0xff]
    %v71 = vld [vmem:[#allocation2 + $0xc0] sm:$0xff]
    %v72 = vld [vmem:[#allocation2 + $0xc8] sm:$0xff]
    %v73 = vld [vmem:[#allocation2 + $0xd0] sm:$0xff]
    %v74 = vld [vmem:[#allocation2 + $0xd8] sm:$0xff]
    %v75 = vld [vmem:[#allocation2 + $0xe0] sm:$0xff]
    %v76 = vld [vmem:[#allocation2 + $0xe8] sm:$0xff]
    %v77 = vld [vmem:[#allocation2 + $0xf0] sm:$0xff]
    %v78 = vld [vmem:[#allocation2 + $0xf8] sm:$0xff]
    %v79 = vld [vmem:[#allocation2 + $0x100] sm:$0xff]
    %v80 = vld [vmem:[#allocation2 + $0x108] sm:$0xff]
    %v81 = vld [vmem:[#allocation2 + $0x110] sm:$0xff]
    %v82 = vld [vmem:[#allocation2 + $0x118] sm:$0xff]
    %v83 = vld [vmem:[#allocation2 + $0x120] sm:$0xff]
    %v84 = vld [vmem:[#allocation2 + $0x128] sm:$0xff]
    %v85 = vld [vmem:[#allocation2 + $0x130] sm:$0xff]
    %v86 = vld [vmem:[#allocation2 + $0x138] sm:$0xff]
    %v87 = vld [vmem:[#allocation2 + $0x140] sm:$0xff]
    %v88 = vld [vmem:[#allocation2 + $0x148] sm:$0xff]
    %v89 = vld [vmem:[#allocation2 + $0x150] sm:$0xff]
    %v90 = vld [vmem:[#allocation2 + $0x158] sm:$0xff]
    %v91 = vld [vmem:[#allocation2 + $0x160] sm:$0xff]
    %v92 = vld [vmem:[#allocation2 + $0x168] sm:$0xff]
    %v93 = vld [vmem:[#allocation2 + $0x170] sm:$0xff]
    %v94 = vld [vmem:[#allocation2 + $0x178] sm:$0xff]
    %v95 = vld [vmem:[#allocation2 + $0x180] sm:$0xff]
    %v96 = vld [vmem:[#allocation2 + $0x188] sm:$0xff]
    %v97 = vld [vmem:[#allocation2 + $0x190] sm:$0xff]
    %v98 = vld [vmem:[#allocation2 + $0x198] sm:$0xff]
    %v99 = vld [vmem:[#allocation2 + $0x1a0] sm:$0xff]
    %v100 = vld [vmem:[#allocation2 + $0x1a8] sm:$0xff]
    %v101 = vld [vmem:[#allocation2 + $0x1b0] sm:$0xff]
    %v102 = vld [vmem:[#allocation2 + $0x1b8] sm:$0xff]
    %v103 = vld [vmem:[#allocation2 + $0x1c0] sm:$0xff]
    %v104 = vld [vmem:[#allocation2 + $0x1c8] sm:$0xff]
    %v105 = vld [vmem:[#allocation2 + $0x1d0] sm:$0xff]
    %v106 = vld [vmem:[#allocation2 + $0x1d8] sm:$0xff]
    %v107 = vld [vmem:[#allocation2 + $0x1e0] sm:$0xff]
    %v108 = vld [vmem:[#allocation2 + $0x1e8] sm:$0xff]
    %v109 = vld [vmem:[#allocation2 + $0x1f0] sm:$0xff]
    %v110 = vld [vmem:[#allocation2 + $0x1f8] sm:$0xff]
    %v111 = vld [vmem:[#allocation5] sm:$0xff]
    %v112 = vld [vmem:[#allocation5 + $0x8] sm:$0xff]
    %v113 = vld [vmem:[#allocation5 + $0x10] sm:$0xff]
    %v114 = vld [vmem:[#allocation5 + $0x18] sm:$0xff]
    %v115 = vld [vmem:[#allocation5 + $0x20] sm:$0xff]
    %v116 = vld [vmem:[#allocation5 + $0x28] sm:$0xff]
    %v117 = vld [vmem:[#allocation5 + $0x30] sm:$0xff]
    %v118 = vld [vmem:[#allocation5 + $0x38] sm:$0xff]
    %v119 = vld [vmem:[#allocation5 + $0x40] sm:$0xff]
    %v120 = vld [vmem:[#allocation5 + $0x48] sm:$0xff]
    %v121 = vld [vmem:[#allocation5 + $0x50] sm:$0xff]
    %v122 = vld [vmem:[#allocation5 + $0x58] sm:$0xff]
    %v123 = vld [vmem:[#allocation5 + $0x60] sm:$0xff]
    %v124 = vld [vmem:[#allocation5 + $0x68] sm:$0xff]
    %v125 = vld [vmem:[#allocation5 + $0x70] sm:$0xff]
    %v126 = vld [vmem:[#allocation5 + $0x78] sm:$0xff]
    %v127 = vld [vmem:[%s2] sm:$0x1]
    %v129 = vperm.slane %v127, 0
    %131 = vmatpush.msra.mxu0 %v126
    %132 = vmatpush.msra.mxu0 %v125
    %133 = vmatpush.msra.mxu0 %v124
    %134 = vmatpush.msra.mxu0 %v123
    %135 = vmatpush.msra.mxu0 %v122
    %136 = vmatpush.msra.mxu0 %v121
    %137 = vmatpush.msra.mxu0 %v120
    %138 = vmatpush.msra.mxu0 %v119
    %139 = vmatpush.msra.mxu0 %v118
    %140 = vmatpush.msra.mxu0 %v117
    %141 = vmatpush.msra.mxu0 %v116
    %142 = vmatpush.msra.mxu0 %v115
    %143 = vmatpush.msra.mxu0 %v114
    %144 = vmatpush.msra.mxu0 %v113
    %145 = vmatpush.msra.mxu0 %v112
    %146 = vmatpush.msra.mxu0 %v111
    %147 = vmatmul.f32.gmra.mxu0 %v47
    %v148 = vpop.f32.mrf.mxu0
    %v149 = vadd.f32 %v129, %v148
    %150 = vmatmul.f32.gmra.mxu0 %v48
    %v151 = vpop.f32.mrf.mxu0
    %v152 = vadd.f32 %v129, %v151
    %153 = vmatmul.f32.gmra.mxu0 %v49
    %v154 = vpop.f32.mrf.mxu0
    %v155 = vadd.f32 %v129, %v154
    %156 = vmatmul.f32.gmra.mxu0 %v50
    %v157 = vpop.f32.mrf.mxu0
    %v158 = vadd.f32 %v129, %v157
    %159 = vmatmul.f32.gmra.mxu0 %v51
    %v160 = vpop.f32.mrf.mxu0
    %v161 = vadd.f32 %v129, %v160
    %162 = vmatmul.f32.gmra.mxu0 %v52
    %v163 = vpop.f32.mrf.mxu0
    %v164 = vadd.f32 %v129, %v163
    %165 = vmatmul.f32.gmra.mxu0 %v53
    %v166 = vpop.f32.mrf.mxu0
    %v167 = vadd.f32 %v129, %v166
    %168 = vmatmul.f32.gmra.mxu0 %v54
    %v169 = vpop.f32.mrf.mxu0
    %v170 = vadd.f32 %v129, %v169
    %171 = vmatmul.f32.gmra.mxu0 %v55
    %v172 = vpop.f32.mrf.mxu0
    %v173 = vadd.f32 %v129, %v172
    %174 = vmatmul.f32.gmra.mxu0 %v56
    %v175 = vpop.f32.mrf.mxu0
    %v176 = vadd.f32 %v129, %v175
    %177 = vmatmul.f32.gmra.mxu0 %v57
    %v178 = vpop.f32.mrf.mxu0
    %v179 = vadd.f32 %v129, %v178
    %180 = vmatmul.f32.gmra.mxu0 %v58
    %v181 = vpop.f32.mrf.mxu0
    %v182 = vadd.f32 %v129, %v181
    %183 = vmatmul.f32.gmra.mxu0 %v59
    %v184 = vpop.f32.mrf.mxu0
    %v185 = vadd.f32 %v129, %v184
    %186 = vmatmul.f32.gmra.mxu0 %v60
    %v187 = vpop.f32.mrf.mxu0
    %v188 = vadd.f32 %v129, %v187
    %189 = vmatmul.f32.gmra.mxu0 %v61
    %v190 = vpop.f32.mrf.mxu0
    %v191 = vadd.f32 %v129, %v190
    %192 = vmatmul.f32.gmra.mxu0 %v62
    %v193 = vpop.f32.mrf.mxu0
    %v194 = vadd.f32 %v129, %v193
    %195 = vmatmul.f32.gmra.mxu0 %v63
    %v196 = vpop.f32.mrf.mxu0
    %v197 = vadd.f32 %v129, %v196
    %198 = vmatmul.f32.gmra.mxu0 %v64
    %v199 = vpop.f32.mrf.mxu0
    %v200 = vadd.f32 %v129, %v199
    %201 = vmatmul.f32.gmra.mxu0 %v65
    %v202 = vpop.f32.mrf.mxu0
    %v203 = vadd.f32 %v129, %v202
    %204 = vmatmul.f32.gmra.mxu0 %v66
    %v205 = vpop.f32.mrf.mxu0
    %v206 = vadd.f32 %v129, %v205
    %207 = vmatmul.f32.gmra.mxu0 %v67
    %v208 = vpop.f32.mrf.mxu0
    %v209 = vadd.f32 %v129, %v208
    %210 = vmatmul.f32.gmra.mxu0 %v68
    %v211 = vpop.f32.mrf.mxu0
    %v212 = vadd.f32 %v129, %v211
    %213 = vmatmul.f32.gmra.mxu0 %v69
    %v214 = vpop.f32.mrf.mxu0
    %v215 = vadd.f32 %v129, %v214
    %216 = vmatmul.f32.gmra.mxu0 %v70
    %v217 = vpop.f32.mrf.mxu0
    %v218 = vadd.f32 %v129, %v217
    %219 = vmatmul.f32.gmra.mxu0 %v71
    %v220 = vpop.f32.mrf.mxu0
    %v221 = vadd.f32 %v129, %v220
    %222 = vmatmul.f32.gmra.mxu0 %v72
    %v223 = vpop.f32.mrf.mxu0
    %v224 = vadd.f32 %v129, %v223
    %225 = vmatmul.f32.gmra.mxu0 %v73
    %v226 = vpop.f32.mrf.mxu0
    %v227 = vadd.f32 %v129, %v226
    %228 = vmatmul.f32.gmra.mxu0 %v74
    %v229 = vpop.f32.mrf.mxu0
    %v230 = vadd.f32 %v129, %v229
    %231 = vmatmul.f32.gmra.mxu0 %v75
    %v232 = vpop.f32.mrf.mxu0
    %v233 = vadd.f32 %v129, %v232
    %234 = vmatmul.f32.gmra.mxu0 %v76
    %v235 = vpop.f32.mrf.mxu0
    %v236 = vadd.f32 %v129, %v235
    %237 = vmatmul.f32.gmra.mxu0 %v77
    %v238 = vpop.f32.mrf.mxu0
    %v239 = vadd.f32 %v129, %v238
    %240 = vmatmul.f32.gmra.mxu0 %v78
    %v241 = vpop.f32.mrf.mxu0
    %v242 = vadd.f32 %v129, %v241
    %243 = vmatmul.f32.gmra.mxu0 %v79
    %v244 = vpop.f32.mrf.mxu0
    %v245 = vadd.f32 %v129, %v244
    %246 = vmatmul.f32.gmra.mxu0 %v80
    %v247 = vpop.f32.mrf.mxu0
    %v248 = vadd.f32 %v129, %v247
    %249 = vmatmul.f32.gmra.mxu0 %v81
    %v250 = vpop.f32.mrf.mxu0
    %v251 = vadd.f32 %v129, %v250
    %252 = vmatmul.f32.gmra.mxu0 %v82
    %v253 = vpop.f32.mrf.mxu0
    %v254 = vadd.f32 %v129, %v253
    %255 = vmatmul.f32.gmra.mxu0 %v83
    %v256 = vpop.f32.mrf.mxu0
    %v257 = vadd.f32 %v129, %v256
    %258 = vmatmul.f32.gmra.mxu0 %v84
    %v259 = vpop.f32.mrf.mxu0
    %v260 = vadd.f32 %v129, %v259
    %261 = vmatmul.f32.gmra.mxu0 %v85
    %v262 = vpop.f32.mrf.mxu0
    %v263 = vadd.f32 %v129, %v262
    %264 = vmatmul.f32.gmra.mxu0 %v86
    %v265 = vpop.f32.mrf.mxu0
    %v266 = vadd.f32 %v129, %v265
    %267 = vmatmul.f32.gmra.mxu0 %v87
    %v268 = vpop.f32.mrf.mxu0
    %v269 = vadd.f32 %v129, %v268
    %270 = vmatmul.f32.gmra.mxu0 %v88
    %v271 = vpop.f32.mrf.mxu0
    %v272 = vadd.f32 %v129, %v271
    %273 = vmatmul.f32.gmra.mxu0 %v89
    %v274 = vpop.f32.mrf.mxu0
    %v275 = vadd.f32 %v129, %v274
    %276 = vmatmul.f32.gmra.mxu0 %v90
    %v277 = vpop.f32.mrf.mxu0
    %v278 = vadd.f32 %v129, %v277
    %279 = vmatmul.f32.gmra.mxu0 %v91
    %v280 = vpop.f32.mrf.mxu0
    %v281 = vadd.f32 %v129, %v280
    %282 = vmatmul.f32.gmra.mxu0 %v92
    %v283 = vpop.f32.mrf.mxu0
    %v284 = vadd.f32 %v129, %v283
    %285 = vmatmul.f32.gmra.mxu0 %v93
    %v286 = vpop.f32.mrf.mxu0
    %v287 = vadd.f32 %v129, %v286
    %288 = vmatmul.f32.gmra.mxu0 %v94
    %v289 = vpop.f32.mrf.mxu0
    %v290 = vadd.f32 %v129, %v289
    %291 = vmatmul.f32.gmra.mxu0 %v95
    %v292 = vpop.f32.mrf.mxu0
    %v293 = vadd.f32 %v129, %v292
    %294 = vmatmul.f32.gmra.mxu0 %v96
    %v295 = vpop.f32.mrf.mxu0
    %v296 = vadd.f32 %v129, %v295
    %297 = vmatmul.f32.gmra.mxu0 %v97
    %v298 = vpop.f32.mrf.mxu0
    %v299 = vadd.f32 %v129, %v298
    %300 = vmatmul.f32.gmra.mxu0 %v98
    %v301 = vpop.f32.mrf.mxu0
    %v302 = vadd.f32 %v129, %v301
    %303 = vmatmul.f32.gmra.mxu0 %v99
    %v304 = vpop.f32.mrf.mxu0
    %v305 = vadd.f32 %v129, %v304
    %306 = vmatmul.f32.gmra.mxu0 %v100
    %v307 = vpop.f32.mrf.mxu0
    %v308 = vadd.f32 %v129, %v307
    %309 = vmatmul.f32.gmra.mxu0 %v101
    %v310 = vpop.f32.mrf.mxu0
    %v311 = vadd.f32 %v129, %v310
    %312 = vmatmul.f32.gmra.mxu0 %v102
    %v313 = vpop.f32.mrf.mxu0
    %v314 = vadd.f32 %v129, %v313
    %315 = vmatmul.f32.gmra.mxu0 %v103
    %v316 = vpop.f32.mrf.mxu0
    %v317 = vadd.f32 %v129, %v316
    %318 = vmatmul.f32.gmra.mxu0 %v104
    %v319 = vpop.f32.mrf.mxu0
    %v320 = vadd.f32 %v129, %v319
    %321 = vmatmul.f32.gmra.mxu0 %v105
    %v322 = vpop.f32.mrf.mxu0
    %v323 = vadd.f32 %v129, %v322
    %324 = vmatmul.f32.gmra.mxu0 %v106
    %v325 = vpop.f32.mrf.mxu0
    %v326 = vadd.f32 %v129, %v325
    %327 = vmatmul.f32.gmra.mxu0 %v107
    %v328 = vpop.f32.mrf.mxu0
    %v329 = vadd.f32 %v129, %v328
    %330 = vmatmul.f32.gmra.mxu0 %v108
    %v331 = vpop.f32.mrf.mxu0
    %v332 = vadd.f32 %v129, %v331
    %333 = vmatmul.f32.gmra.mxu0 %v109
    %v334 = vpop.f32.mrf.mxu0
    %v335 = vadd.f32 %v129, %v334
    %336 = vmatmul.f32.gmra.mxu0 %v110
    %v337 = vpop.f32.mrf.mxu0
    %v338 = vadd.f32 %v129, %v337
    %339 = vdwg.mxu0
    %v340 = vmax.f32 %v149, 0.0
    %v341 = vmax.f32 %v152, 0.0
    %v342 = vmax.f32 %v155, 0.0
    %v343 = vmax.f32 %v158, 0.0
    %v344 = vmax.f32 %v161, 0.0
    %v345 = vmax.f32 %v164, 0.0
    %v346 = vmax.f32 %v167, 0.0
    %v347 = vmax.f32 %v170, 0.0
    %v348 = vmax.f32 %v173, 0.0
    %v349 = vmax.f32 %v176, 0.0
    %v350 = vmax.f32 %v179, 0.0
    %v351 = vmax.f32 %v182, 0.0
    %v352 = vmax.f32 %v185, 0.0
    %v353 = vmax.f32 %v188, 0.0
    %v354 = vmax.f32 %v191, 0.0
    %v355 = vmax.f32 %v194, 0.0
    %v356 = vmax.f32 %v197, 0.0
    %v357 = vmax.f32 %v200, 0.0
    %v358 = vmax.f32 %v203, 0.0
    %v359 = vmax.f32 %v206, 0.0
    %v360 = vmax.f32 %v209, 0.0
    %v361 = vmax.f32 %v212, 0.0
    %v362 = vmax.f32 %v215, 0.0
    %v363 = vmax.f32 %v218, 0.0
    %v364 = vmax.f32 %v221, 0.0
    %v365 = vmax.f32 %v224, 0.0
    %v366 = vmax.f32 %v227, 0.0
    %v367 = vmax.f32 %v230, 0.0
    %v368 = vmax.f32 %v233, 0.0
    %v369 = vmax.f32 %v236, 0.0
    %v370 = vmax.f32 %v239, 0.0
    %v371 = vmax.f32 %v242, 0.0
    %v372 = vmax.f32 %v245, 0.0
    %v373 = vmax.f32 %v248, 0.0
    %v374 = vmax.f32 %v251, 0.0
    %v375 = vmax.f32 %v254, 0.0
    %v376 = vmax.f32 %v257, 0.0
    %v377 = vmax.f32 %v260, 0.0
    %v378 = vmax.f32 %v263, 0.0
    %v379 = vmax.f32 %v266, 0.0
    %v380 = vmax.f32 %v269, 0.0
    %v381 = vmax.f32 %v272, 0.0
    %v382 = vmax.f32 %v275, 0.0
    %v383 = vmax.f32 %v278, 0.0
    %v384 = vmax.f32 %v281, 0.0
    %v385 = vmax.f32 %v284, 0.0
    %v386 = vmax.f32 %v287, 0.0
    %v387 = vmax.f32 %v290, 0.0
    %v388 = vmax.f32 %v293, 0.0
    %v389 = vmax.f32 %v296, 0.0
    %v390 = vmax.f32 %v299, 0.0
    %v391 = vmax.f32 %v302, 0.0
    %v392 = vmax.f32 %v305, 0.0
    %v393 = vmax.f32 %v308, 0.0
    %v394 = vmax.f32 %v311, 0.0
    %v395 = vmax.f32 %v314, 0.0
    %v396 = vmax.f32 %v317, 0.0
    %v397 = vmax.f32 %v320, 0.0
    %v398 = vmax.f32 %v323, 0.0
    %v399 = vmax.f32 %v326, 0.0
    %v400 = vmax.f32 %v329, 0.0
    %v401 = vmax.f32 %v332, 0.0
    %v402 = vmax.f32 %v335, 0.0
    %v403 = vmax.f32 %v338, 0.0
    %404 = vst [vmem:[#allocation7] sm:$0xff] %v340
    %405 = vst [vmem:[#allocation7 + $0x8] sm:$0xff] %v341
    %406 = vst [vmem:[#allocation7 + $0x10] sm:$0xff] %v342
    %407 = vst [vmem:[#allocation7 + $0x18] sm:$0xff] %v343
    %408 = vst [vmem:[#allocation7 + $0x20] sm:$0xff] %v344
    %409 = vst [vmem:[#allocation7 + $0x28] sm:$0xff] %v345
    %410 = vst [vmem:[#allocation7 + $0x30] sm:$0xff] %v346
    %411 = vst [vmem:[#allocation7 + $0x38] sm:$0xff] %v347
    %412 = vst [vmem:[#allocation7 + $0x40] sm:$0xff] %v348
    %413 = vst [vmem:[#allocation7 + $0x48] sm:$0xff] %v349
    %414 = vst [vmem:[#allocation7 + $0x50] sm:$0xff] %v350
    %415 = vst [vmem:[#allocation7 + $0x58] sm:$0xff] %v351
    %416 = vst [vmem:[#allocation7 + $0x60] sm:$0xff] %v352
    %417 = vst [vmem:[#allocation7 + $0x68] sm:$0xff] %v353
    %418 = vst [vmem:[#allocation7 + $0x70] sm:$0xff] %v354
    %419 = vst [vmem:[#allocation7 + $0x78] sm:$0xff] %v355
    %420 = vst [vmem:[#allocation7 + $0x80] sm:$0xff] %v356
    %421 = vst [vmem:[#allocation7 + $0x88] sm:$0xff] %v357
    %422 = vst [vmem:[#allocation7 + $0x90] sm:$0xff] %v358
    %423 = vst [vmem:[#allocation7 + $0x98] sm:$0xff] %v359
    %424 = vst [vmem:[#allocation7 + $0xa0] sm:$0xff] %v360
    %425 = vst [vmem:[#allocation7 + $0xa8] sm:$0xff] %v361
    %426 = vst [vmem:[#allocation7 + $0xb0] sm:$0xff] %v362
    %427 = vst [vmem:[#allocation7 + $0xb8] sm:$0xff] %v363
    %428 = vst [vmem:[#allocation7 + $0xc0] sm:$0xff] %v364
    %429 = vst [vmem:[#allocation7 + $0xc8] sm:$0xff] %v365
    %430 = vst [vmem:[#allocation7 + $0xd0] sm:$0xff] %v366
    %431 = vst [vmem:[#allocation7 + $0xd8] sm:$0xff] %v367
    %432 = vst [vmem:[#allocation7 + $0xe0] sm:$0xff] %v368
    %433 = vst [vmem:[#allocation7 + $0xe8] sm:$0xff] %v369
    %434 = vst [vmem:[#allocation7 + $0xf0] sm:$0xff] %v370
    %435 = vst [vmem:[#allocation7 + $0xf8] sm:$0xff] %v371
    %436 = vst [vmem:[#allocation7 + $0x100] sm:$0xff] %v372
    %437 = vst [vmem:[#allocation7 + $0x108] sm:$0xff] %v373
    %438 = vst [vmem:[#allocation7 + $0x110] sm:$0xff] %v374
    %439 = vst [vmem:[#allocation7 + $0x118] sm:$0xff] %v375
    %440 = vst [vmem:[#allocation7 + $0x120] sm:$0xff] %v376
    %441 = vst [vmem:[#allocation7 + $0x128] sm:$0xff] %v377
    %442 = vst [vmem:[#allocation7 + $0x130] sm:$0xff] %v378
    %443 = vst [vmem:[#allocation7 + $0x138] sm:$0xff] %v379
    %444 = vst [vmem:[#allocation7 + $0x140] sm:$0xff] %v380
    %445 = vst [vmem:[#allocation7 + $0x148] sm:$0xff] %v381
    %446 = vst [vmem:[#allocation7 + $0x150] sm:$0xff] %v382
    %447 = vst [vmem:[#allocation7 + $0x158] sm:$0xff] %v383
    %448 = vst [vmem:[#allocation7 + $0x160] sm:$0xff] %v384
    %449 = vst [vmem:[#allocation7 + $0x168] sm:$0xff] %v385
    %450 = vst [vmem:[#allocation7 + $0x170] sm:$0xff] %v386
    %451 = vst [vmem:[#allocation7 + $0x178] sm:$0xff] %v387
    %452 = vst [vmem:[#allocation7 + $0x180] sm:$0xff] %v388
    %453 = vst [vmem:[#allocation7 + $0x188] sm:$0xff] %v389
    %454 = vst [vmem:[#allocation7 + $0x190] sm:$0xff] %v390
    %455 = vst [vmem:[#allocation7 + $0x198] sm:$0xff] %v391
    %456 = vst [vmem:[#allocation7 + $0x1a0] sm:$0xff] %v392
    %457 = vst [vmem:[#allocation7 + $0x1a8] sm:$0xff] %v393
    %458 = vst [vmem:[#allocation7 + $0x1b0] sm:$0xff] %v394
    %459 = vst [vmem:[#allocation7 + $0x1b8] sm:$0xff] %v395
    %460 = vst [vmem:[#allocation7 + $0x1c0] sm:$0xff] %v396
    %461 = vst [vmem:[#allocation7 + $0x1c8] sm:$0xff] %v397
    %462 = vst [vmem:[#allocation7 + $0x1d0] sm:$0xff] %v398
    %463 = vst [vmem:[#allocation7 + $0x1d8] sm:$0xff] %v399
    %464 = vst [vmem:[#allocation7 + $0x1e0] sm:$0xff] %v400
    %465 = vst [vmem:[#allocation7 + $0x1e8] sm:$0xff] %v401
    %466 = vst [vmem:[#allocation7 + $0x1f0] sm:$0xff] %v402
    %467 = vst [vmem:[#allocation7 + $0x1f8] sm:$0xff] %v403
    // Predicated region
    $region22: #{tpu_custom_call.1} parent=1 // pred_check
      _
    $region23: #{tpu_custom_call.1} parent=1 // pred_check_branch
      %469 = sbr.rel (0) target = $region25
    $region24: #{tpu_custom_call.1} parent=1 // pred_region
      %471 = vsyncadd [#allocation4], 0
      %s472 = sshll.u32 [#allocation7], 4
      %s473 = int_to_ptr.vmem [resolvable:$true] %s472
      %s474 = sshll.u32 %s3, 4
      %s475 = int_to_ptr.hbm [resolvable:$true] %s474
      %480 = dma.vmem_to_hbm [thread:$0]  %s473, 8192, %s475, [#allocation4], 128, 128, 8
    $region25: #{tpu_custom_call.1} parent=1 // pred_fallthru
      _
    // Predicated region
    $region26: #{tpu_custom_call.1} parent=1 // pred_check
      _
    $region27: #{tpu_custom_call.1} parent=1 // pred_check_branch
      %482 = sbr.rel (0) target = $region29
    $region28: #{tpu_custom_call.1} parent=1 // pred_region
      %484 = dma.done [#allocation4], 8192
    $region29: #{tpu_custom_call.1} parent=1 // pred_fallthru
      _
    %485 = vsyncpa [#allocation3], 1
    %486 = vsyncpa [#allocation6], 1
    %487 = vsyncpa [#allocation4], 1

</llo_original>
